<compile_context>
chip_gen: v7x
topology: tpu7x:2x2x1
jax: 0.10.0
libtpu: 0.0.40
codegen_flags: <defaults>
</compile_context>

<pallas_src>
import functools
import math

import jax
import jax.numpy as jnp
from jax.experimental import pallas as pl
from jax.experimental.pallas import tpu as pltpu

# ---- synthetic "params['train']['loss']" configuration (deterministic) ----
DT = 0.01                      # params['train']['loss']['dt']
DV_NORMED_WINDOWS = (16, 32)   # params['train']['loss']['dv_normed'] keys
_EPS = 1e-12


def _round_up(x, m):
    return -(-x // m) * m


def _smooth_l1(x):
    # torch.nn.SmoothL1Loss (beta=1), elementwise. 5-op form, no compare+select:
    #   c = min(|x|, 1);  sl1 = c * (|x| - 0.5 * c)
    ax = jnp.abs(x)
    c = jnp.minimum(ax, 1.0)
    return c * (ax - 0.5 * c)


def _dga_loss_kernel(a_ref, d16_ref, d32_ref, g16_ref, g32_ref, out_ref, *, t_valid):
    """Inputs: (3, TB, N) f32 VMEM blocks (channel, batch-tile, padded time).
       Output: (1, 4) f32 SMEM block of unscaled partial sums for this batch tile:
         [sum sl1(dv16 diff), sum sl1(dv32 diff), sum sl1(normed16 diff), sum sl1(normed32 diff)]
       `t_valid` is the ORIGINAL (un-padded) time length; masks are keyed to it so the
       zero-padded lanes and roll wrap-around contribute exactly zero."""
    C, TB, N = a_ref.shape  # C == 3

    lane = jax.lax.broadcasted_iota(jnp.int32, (TB, N), 1)
    dt = jnp.float32(DT)
    # Fused (validity mask * DT) multipliers: applied once to h16/h32, which also zeros
    # sq16/sq32 and the dv/normed diffs on padded/wrapped lanes (targets are zero-padded).
    m16dt = jnp.where(lane < (t_valid - 16), dt, jnp.float32(0.0))
    m32dt = jnp.where(lane < (t_valid - 32), dt, jnp.float32(0.0))

    def shift_left(x, k):
        # result[..., t] = x[..., (t + k) % N]; the circular wrap lands only in the
        # masked tail (t >= t_valid - 32 <= N - 32), so the valid region is exact.
        return pltpu.roll(x, N - k, axis=1)

    def window16(x):
        # s[t] = sum_{s=t+1}^{t+16} x[s]  via log-step shifted adds (exact f32).
        s = shift_left(x, 1)
        s = s + shift_left(s, 1)
        s = s + shift_left(s, 2)
        s = s + shift_left(s, 4)
        s = s + shift_left(s, 8)
        return s

    h16s = []
    h32s = []
    sq16 = jnp.zeros((TB, N), jnp.float32)
    sq32 = jnp.zeros((TB, N), jnp.float32)
    acc_dv16 = jnp.zeros((TB, N), jnp.float32)
    acc_dv32 = jnp.zeros((TB, N), jnp.float32)

    for c in range(C):  # C == 3, tiny static unroll; batch is vectorized on sublanes
        w16 = window16(a_ref[c])
        w32 = w16 + shift_left(w16, 16)
        h16 = w16 * m16dt            # dv16_hat[c] = v[t+16] - v[t], masked tail = 0
        h32 = w32 * m32dt            # dv32_hat[c] = v[t+32] - v[t], masked tail = 0
        h16s.append(h16)
        h32s.append(h32)
        sq16 = sq16 + h16 * h16
        sq32 = sq32 + h32 * h32
        # dv loss: targets are zero-padded, so the tail diff is exactly 0 -> sl1 = 0.
        acc_dv16 = acc_dv16 + _smooth_l1(d16_ref[c] - h16)
        acc_dv32 = acc_dv32 + _smooth_l1(d32_ref[c] - h32)

    # vnorm: L2-normalize dv over the 3 axes; single EUP rsqrt (h* is 0 on masked lanes,
    # so even the 1/eps blow-up there multiplies a zero).
    inv16 = jax.lax.rsqrt(sq16 + jnp.float32(_EPS * _EPS))
    inv32 = jax.lax.rsqrt(sq32 + jnp.float32(_EPS * _EPS))

    acc_n16 = jnp.zeros((TB, N), jnp.float32)
    acc_n32 = jnp.zeros((TB, N), jnp.float32)
    for c in range(C):
        acc_n16 = acc_n16 + _smooth_l1(g16_ref[c] - h16s[c] * inv16)
        acc_n32 = acc_n32 + _smooth_l1(g32_ref[c] - h32s[c] * inv32)

    out_ref[0, 0] = jnp.sum(acc_dv16)
    out_ref[0, 1] = jnp.sum(acc_dv32)
    out_ref[0, 2] = jnp.sum(acc_n16)
    out_ref[0, 3] = jnp.sum(acc_n32)


def _vmem_capacity_bytes():
    try:
        info = pltpu.get_tpu_info()
        cap = getattr(info, "vmem_capacity_bytes", None)
        if cap:
            return int(cap)
    except Exception:
        pass
    return 64 * 1024 * 1024  # v7x worst case


def to_channels_major(x):
    """(B, Tw, 3) -> (3, B, Tw). Do this ONCE upstream for the 4 static target tensors
    so the per-call wrapper never transposes them (review: decisive on HBM-bound v5e)."""
    return jnp.transpose(jnp.asarray(x, jnp.float32), (2, 0, 1))


def dga_loss_ver2(a_hat, dv_16, dv_32, gt_dv_normed, *,
                  targets_channels_major=False, batch_tile=None, buffer_count=None):
    """a_hat: (B, T, 3) (PyTorch convention, per-call model output).
    Targets: either PyTorch layout (B, Tw, 3) [targets_channels_major=False] or
    pre-stored channels-major (3, B, Tw) [targets_channels_major=True, preferred].
    gt_dv_normed is a dict with keys '16' and '32'."""
    a_hat = jnp.asarray(a_hat, jnp.float32)
    B, T, C = a_hat.shape
    assert C == 3 and T > 32

    T_pad = _round_up(T, 128)          # lane-dense tiles; masks keyed to original T below

    # --- per-generation batch-tile sizing (review formula ~176 * TB * T bytes/step) ---
    vmem_cap = _vmem_capacity_bytes()
    budget = int(vmem_cap * 0.6)        # headroom for compiler scratch / spills
    bytes_per_row = 176 * T_pad         # 2x5 double-buffered (3,TB,T) inputs + ~14 f32 temps
    if batch_tile is None:
        TB = max(8, min(256, (budget // bytes_per_row) // 8 * 8))
    else:
        TB = max(8, _round_up(int(batch_tile), 8))
    Bp8 = _round_up(B, 8)
    if Bp8 >= 16:
        # keep >= 2 grid blocks so both v7x TensorCores get work
        TB = min(TB, max(8, (Bp8 // 2) // 8 * 8))
    TB = min(TB, Bp8)
    num_blocks = -(-B // TB)
    Bp = num_blocks * TB                # zero-padded rows contribute exactly 0 to all sums

    def pad_cm(x):   # channels-major (3, b, tw) -> (3, Bp, T_pad), zero pad only
        x = jnp.asarray(x, jnp.float32)
        assert x.shape[0] == 3
        return jnp.pad(x, ((0, 0), (0, Bp - x.shape[1]), (0, T_pad - x.shape[2])))

    def pad_bm(x):   # batch-major (b, tw, 3) -> (3, Bp, T_pad)
        x = jnp.asarray(x, jnp.float32)
        return pad_cm(jnp.transpose(x, (2, 0, 1)))

    a = pad_bm(a_hat)                   # only per-call transpose
    if targets_channels_major:
        d16, d32 = pad_cm(dv_16), pad_cm(dv_32)
        g16, g32 = pad_cm(gt_dv_normed['16']), pad_cm(gt_dv_normed['32'])
    else:
        d16, d32 = pad_bm(dv_16), pad_bm(dv_32)
        g16, g32 = pad_bm(gt_dv_normed['16']), pad_bm(gt_dv_normed['32'])

    spec_kwargs = {}
    if buffer_count is not None:        # review: sweep Buffered(3) on v6e/v7x if DMA exposed
        spec_kwargs["pipeline_mode"] = pl.Buffered(int(buffer_count))
    in_spec = pl.BlockSpec((3, TB, T_pad), lambda i: (0, i, 0), **spec_kwargs)
    out_spec = pl.BlockSpec((1, 4), lambda i: (i, 0),
                            memory_space=pltpu.MemorySpace.SMEM)

    cost = pl.CostEstimate(
        flops=int(120 * Bp * T_pad),
        transcendentals=int(2 * Bp * T_pad),
        bytes_accessed=int(5 * 3 * Bp * T_pad * 4 + num_blocks * 4 * 4),
    )

    partial = pl.pallas_call(
        functools.partial(_dga_loss_kernel, t_valid=T),
        out_shape=jax.ShapeDtypeStruct((num_blocks, 4), jnp.float32),
        grid=(num_blocks,),
        in_specs=[in_spec] * 5,
        out_specs=out_spec,
        compiler_params=pltpu.CompilerParams(
            dimension_semantics=("parallel",),
            vmem_limit_bytes=min(int(vmem_cap * 0.75), 128 * 1024 * 1024)),
        cost_estimate=cost,
    )(a, d16, d32, g16, g32)

    sums = jnp.sum(partial, axis=0)                       # (4,) unscaled partial sums
    dv_16_loss = sums[0] / (B * 3 * (T - 16))             # SmoothL1Loss(reduction='mean')
    dv_32_loss = sums[1] / (B * 3 * (T - 32))
    n16_loss = sums[2] * (10.0 * math.log(16.0)) / (T - 16)  # (sln*10*log(w)).mean(dim=1).sum()
    n32_loss = sums[3] * (10.0 * math.log(32.0)) / (T - 32)

    loss = dv_16_loss + dv_32_loss + n16_loss + n32_loss
    parts = jnp.stack([dv_16_loss, dv_32_loss, n16_loss, n32_loss])
    return loss, parts


def _smooth_l1_ref(x):
    ax = jnp.abs(x)
    return jnp.where(ax < 1.0, 0.5 * x * x, ax - 0.5)


def _reference_loss(a_hat, dv_16, dv_32, gt_dv_normed):
    """Pure-JAX reference mirroring the PyTorch forward."""
    v = jnp.cumsum(a_hat, axis=1) * DT
    dv16_hat = v[:, 16:] - v[:, :-16]
    dv32_hat = v[:, 32:] - v[:, :-32]
    loss = (jnp.mean(_smooth_l1_ref(dv_16 - dv16_hat))
            + jnp.mean(_smooth_l1_ref(dv_32 - dv32_hat)))
    for w in DV_NORMED_WINDOWS:
        dvw = v[:, w:] - v[:, :-w]
        normed = dvw / (jnp.linalg.norm(dvw, axis=-1, keepdims=True) + _EPS)
        s = _smooth_l1_ref(gt_dv_normed[str(w)] - normed) * (10.0 * math.log(w))
        loss = loss + jnp.sum(jnp.mean(s, axis=1))
    return loss


def _unit(x):
    return x / (jnp.linalg.norm(x, axis=-1, keepdims=True) + _EPS)


def _make_inputs(key, B, T):
    k1, k2, k3, k4, k5 = jax.random.split(key, 5)
    a_hat = jax.random.normal(k1, (B, T, 3), dtype=jnp.float32)
    dv_16 = 0.1 * jax.random.normal(k2, (B, T - 16, 3), dtype=jnp.float32)
    dv_32 = 0.1 * jax.random.normal(k3, (B, T - 32, 3), dtype=jnp.float32)
    gt = {'16': _unit(jax.random.normal(k4, (B, T - 16, 3), dtype=jnp.float32)),
          '32': _unit(jax.random.normal(k5, (B, T - 32, 3), dtype=jnp.float32))}
    return a_hat, dv_16, dv_32, gt


if __name__ == "__main__":
    key = jax.random.PRNGKey(0)
    k_a, k_b = jax.random.split(key)

    # --- case 1: small shapes, T already a multiple of 128 ---
    B, T = 2, 128
    a_hat, dv_16, dv_32, gt = _make_inputs(k_a, B, T)

    # Targets pre-stored channels-major ONCE (simulating upstream storage) so the
    # per-call wrapper does no transpose for them.
    dv_16_cm, dv_32_cm = to_channels_major(dv_16), to_channels_major(dv_32)
    gt_cm = {'16': to_channels_major(gt['16']), '32': to_channels_major(gt['32'])}

    loss, parts = dga_loss_ver2(a_hat, dv_16_cm, dv_32_cm, gt_cm,
                                targets_channels_major=True)
    loss = jax.block_until_ready(loss)
    ref = _reference_loss(a_hat, dv_16, dv_32, gt)
    assert jnp.isfinite(loss), "kernel produced non-finite loss"
    assert jnp.allclose(loss, ref, rtol=2e-3, atol=2e-3), (loss, ref)

    # Compatibility path: targets in the original PyTorch (B, Tw, 3) layout.
    loss_compat, _ = dga_loss_ver2(a_hat, dv_16, dv_32, gt)
    loss_compat = jax.block_until_ready(loss_compat)
    assert jnp.allclose(loss_compat, ref, rtol=2e-3, atol=2e-3), (loss_compat, ref)

    # --- case 2: non-multiple-of-128 T and batch < 8 (exercises the pad + mask path) ---
    B2, T2 = 3, 150
    a2, d16_2, d32_2, gt2 = _make_inputs(k_b, B2, T2)
    loss2, _ = dga_loss_ver2(a2, to_channels_major(d16_2), to_channels_major(d32_2),
                             {'16': to_channels_major(gt2['16']),
                              '32': to_channels_major(gt2['32'])},
                             targets_channels_major=True)
    loss2 = jax.block_until_ready(loss2)
    ref2 = _reference_loss(a2, d16_2, d32_2, gt2)
    assert jnp.isfinite(loss2), "kernel produced non-finite loss (padded case)"
    assert jnp.allclose(loss2, ref2, rtol=2e-3, atol=2e-3), (loss2, ref2)

    print("KERNEL_OK")
</pallas_src>

<mosaic_0001>
module attributes {stable_mosaic.version = 11 : i64} {
  func.func @_dga_loss_kernel(%arg0: i32, %arg1: memref<3x8x128xf32, #tpu.memory_space<vmem>>, %arg2: memref<3x8x128xf32, #tpu.memory_space<vmem>>, %arg3: memref<3x8x128xf32, #tpu.memory_space<vmem>>, %arg4: memref<3x8x128xf32, #tpu.memory_space<vmem>>, %arg5: memref<3x8x128xf32, #tpu.memory_space<vmem>>, %arg6: memref<1x4xf32, #tpu.memory_space<smem>>) attributes {dimension_semantics = [#tpu.dimension_semantics<parallel>], iteration_bounds = array<i64: 1>, scalar_prefetch = 0 : i64, scratch_operands = 0 : i64, tpu.core_type = #tpu.core_type<tc>, window_params = [{transform_indices = @transform_0, window_bounds = array<i64: 3, 8, 128>}, {transform_indices = @transform_1, window_bounds = array<i64: 3, 8, 128>}, {transform_indices = @transform_2, window_bounds = array<i64: 3, 8, 128>}, {transform_indices = @transform_3, window_bounds = array<i64: 3, 8, 128>}, {transform_indices = @transform_4, window_bounds = array<i64: 3, 8, 128>}, {transform_indices = @transform_5, window_bounds = array<i64: 1, 4>}]} {
    %0 = tpu.iota {dimensions = array<i32: 1>} : vector<8x128xi32>
    %c112_i32 = arith.constant 112 : i32
    %1 = vector.broadcast %c112_i32 : i32 to vector<8x128xi32>
    %2 = arith.cmpi slt, %0, %1 : vector<8x128xi32>
    %cst = arith.constant 0.00999999977 : f32
    %cst_0 = arith.constant 0.000000e+00 : f32
    %3 = vector.broadcast %cst : f32 to vector<8x128xf32>
    %4 = vector.broadcast %cst_0 : f32 to vector<8x128xf32>
    %5 = arith.select %2, %3, %4 : vector<8x128xi1>, vector<8x128xf32>
    %c96_i32 = arith.constant 96 : i32
    %6 = vector.broadcast %c96_i32 : i32 to vector<8x128xi32>
    %7 = arith.cmpi slt, %0, %6 : vector<8x128xi32>
    %cst_1 = arith.constant 0.00999999977 : f32
    %cst_2 = arith.constant 0.000000e+00 : f32
    %8 = vector.broadcast %cst_1 : f32 to vector<8x128xf32>
    %9 = vector.broadcast %cst_2 : f32 to vector<8x128xf32>
    %10 = arith.select %7, %8, %9 : vector<8x128xi1>, vector<8x128xf32>
    %cst_3 = arith.constant 0.000000e+00 : f32
    %11 = vector.broadcast %cst_3 : f32 to vector<8x128xf32>
    %cst_4 = arith.constant 0.000000e+00 : f32
    %12 = vector.broadcast %cst_4 : f32 to vector<8x128xf32>
    %cst_5 = arith.constant 0.000000e+00 : f32
    %13 = vector.broadcast %cst_5 : f32 to vector<8x128xf32>
    %cst_6 = arith.constant 0.000000e+00 : f32
    %14 = vector.broadcast %cst_6 : f32 to vector<8x128xf32>
    %c0 = arith.constant 0 : index
    %c0_7 = arith.constant 0 : index
    %c0_8 = arith.constant 0 : index
    %15 = vector.load %arg1[%c0, %c0_7, %c0_8] : memref<3x8x128xf32, #tpu.memory_space<vmem>>, vector<1x8x128xf32>
    %16 = vector.shape_cast %15 : vector<1x8x128xf32> to vector<8x128xf32>
    %c127_i32 = arith.constant 127 : i32
    %17 = tpu.dynamic_rotate %16 by %c127_i32 dim 1 : vector<8x128xf32>, i32 -> vector<8x128xf32>
    %c127_i32_9 = arith.constant 127 : i32
    %18 = tpu.dynamic_rotate %17 by %c127_i32_9 dim 1 : vector<8x128xf32>, i32 -> vector<8x128xf32>
    %19 = arith.addf %17, %18 : vector<8x128xf32>
    %c126_i32 = arith.constant 126 : i32
    %20 = tpu.dynamic_rotate %19 by %c126_i32 dim 1 : vector<8x128xf32>, i32 -> vector<8x128xf32>
    %21 = arith.addf %19, %20 : vector<8x128xf32>
    %c124_i32 = arith.constant 124 : i32
    %22 = tpu.dynamic_rotate %21 by %c124_i32 dim 1 : vector<8x128xf32>, i32 -> vector<8x128xf32>
    %23 = arith.addf %21, %22 : vector<8x128xf32>
    %c120_i32 = arith.constant 120 : i32
    %24 = tpu.dynamic_rotate %23 by %c120_i32 dim 1 : vector<8x128xf32>, i32 -> vector<8x128xf32>
    %25 = arith.addf %23, %24 : vector<8x128xf32>
    %c112_i32_10 = arith.constant 112 : i32
    %26 = tpu.dynamic_rotate %25 by %c112_i32_10 dim 1 : vector<8x128xf32>, i32 -> vector<8x128xf32>
    %27 = arith.addf %25, %26 : vector<8x128xf32>
    %28 = arith.mulf %25, %5 : vector<8x128xf32>
    %29 = arith.mulf %27, %10 : vector<8x128xf32>
    %30 = arith.mulf %28, %28 : vector<8x128xf32>
    %31 = arith.addf %11, %30 : vector<8x128xf32>
    %32 = arith.mulf %29, %29 : vector<8x128xf32>
    %33 = arith.addf %12, %32 : vector<8x128xf32>
    %c0_11 = arith.constant 0 : index
    %c0_12 = arith.constant 0 : index
    %c0_13 = arith.constant 0 : index
    %34 = vector.load %arg2[%c0_11, %c0_12, %c0_13] : memref<3x8x128xf32, #tpu.memory_space<vmem>>, vector<1x8x128xf32>
    %35 = vector.shape_cast %34 : vector<1x8x128xf32> to vector<8x128xf32>
    %36 = arith.subf %35, %28 : vector<8x128xf32>
    %37 = math.absf %36 : vector<8x128xf32>
    %cst_14 = arith.constant 1.000000e+00 : f32
    %38 = vector.broadcast %cst_14 : f32 to vector<8x128xf32>
    %39 = arith.minimumf %37, %38 : vector<8x128xf32>
    %cst_15 = arith.constant 5.000000e-01 : f32
    %40 = vector.broadcast %cst_15 : f32 to vector<8x128xf32>
    %41 = arith.mulf %40, %39 : vector<8x128xf32>
    %42 = arith.subf %37, %41 : vector<8x128xf32>
    %43 = arith.mulf %39, %42 : vector<8x128xf32>
    %44 = arith.addf %13, %43 : vector<8x128xf32>
    %c0_16 = arith.constant 0 : index
    %c0_17 = arith.constant 0 : index
    %c0_18 = arith.constant 0 : index
    %45 = vector.load %arg3[%c0_16, %c0_17, %c0_18] : memref<3x8x128xf32, #tpu.memory_space<vmem>>, vector<1x8x128xf32>
    %46 = vector.shape_cast %45 : vector<1x8x128xf32> to vector<8x128xf32>
    %47 = arith.subf %46, %29 : vector<8x128xf32>
    %48 = math.absf %47 : vector<8x128xf32>
    %cst_19 = arith.constant 1.000000e+00 : f32
    %49 = vector.broadcast %cst_19 : f32 to vector<8x128xf32>
    %50 = arith.minimumf %48, %49 : vector<8x128xf32>
    %cst_20 = arith.constant 5.000000e-01 : f32
    %51 = vector.broadcast %cst_20 : f32 to vector<8x128xf32>
    %52 = arith.mulf %51, %50 : vector<8x128xf32>
    %53 = arith.subf %48, %52 : vector<8x128xf32>
    %54 = arith.mulf %50, %53 : vector<8x128xf32>
    %55 = arith.addf %14, %54 : vector<8x128xf32>
    %c1 = arith.constant 1 : index
    %c0_21 = arith.constant 0 : index
    %c0_22 = arith.constant 0 : index
    %56 = vector.load %arg1[%c1, %c0_21, %c0_22] : memref<3x8x128xf32, #tpu.memory_space<vmem>>, vector<1x8x128xf32>
    %57 = vector.shape_cast %56 : vector<1x8x128xf32> to vector<8x128xf32>
    %c127_i32_23 = arith.constant 127 : i32
    %58 = tpu.dynamic_rotate %57 by %c127_i32_23 dim 1 : vector<8x128xf32>, i32 -> vector<8x128xf32>
    %c127_i32_24 = arith.constant 127 : i32
    %59 = tpu.dynamic_rotate %58 by %c127_i32_24 dim 1 : vector<8x128xf32>, i32 -> vector<8x128xf32>
    %60 = arith.addf %58, %59 : vector<8x128xf32>
    %c126_i32_25 = arith.constant 126 : i32
    %61 = tpu.dynamic_rotate %60 by %c126_i32_25 dim 1 : vector<8x128xf32>, i32 -> vector<8x128xf32>
    %62 = arith.addf %60, %61 : vector<8x128xf32>
    %c124_i32_26 = arith.constant 124 : i32
    %63 = tpu.dynamic_rotate %62 by %c124_i32_26 dim 1 : vector<8x128xf32>, i32 -> vector<8x128xf32>
    %64 = arith.addf %62, %63 : vector<8x128xf32>
    %c120_i32_27 = arith.constant 120 : i32
    %65 = tpu.dynamic_rotate %64 by %c120_i32_27 dim 1 : vector<8x128xf32>, i32 -> vector<8x128xf32>
    %66 = arith.addf %64, %65 : vector<8x128xf32>
    %c112_i32_28 = arith.constant 112 : i32
    %67 = tpu.dynamic_rotate %66 by %c112_i32_28 dim 1 : vector<8x128xf32>, i32 -> vector<8x128xf32>
    %68 = arith.addf %66, %67 : vector<8x128xf32>
    %69 = arith.mulf %66, %5 : vector<8x128xf32>
    %70 = arith.mulf %68, %10 : vector<8x128xf32>
    %71 = arith.mulf %69, %69 : vector<8x128xf32>
    %72 = arith.addf %31, %71 : vector<8x128xf32>
    %73 = arith.mulf %70, %70 : vector<8x128xf32>
    %74 = arith.addf %33, %73 : vector<8x128xf32>
    %c1_29 = arith.constant 1 : index
    %c0_30 = arith.constant 0 : index
    %c0_31 = arith.constant 0 : index
    %75 = vector.load %arg2[%c1_29, %c0_30, %c0_31] : memref<3x8x128xf32, #tpu.memory_space<vmem>>, vector<1x8x128xf32>
    %76 = vector.shape_cast %75 : vector<1x8x128xf32> to vector<8x128xf32>
    %77 = arith.subf %76, %69 : vector<8x128xf32>
    %78 = math.absf %77 : vector<8x128xf32>
    %cst_32 = arith.constant 1.000000e+00 : f32
    %79 = vector.broadcast %cst_32 : f32 to vector<8x128xf32>
    %80 = arith.minimumf %78, %79 : vector<8x128xf32>
    %cst_33 = arith.constant 5.000000e-01 : f32
    %81 = vector.broadcast %cst_33 : f32 to vector<8x128xf32>
    %82 = arith.mulf %81, %80 : vector<8x128xf32>
    %83 = arith.subf %78, %82 : vector<8x128xf32>
    %84 = arith.mulf %80, %83 : vector<8x128xf32>
    %85 = arith.addf %44, %84 : vector<8x128xf32>
    %c1_34 = arith.constant 1 : index
    %c0_35 = arith.constant 0 : index
    %c0_36 = arith.constant 0 : index
    %86 = vector.load %arg3[%c1_34, %c0_35, %c0_36] : memref<3x8x128xf32, #tpu.memory_space<vmem>>, vector<1x8x128xf32>
    %87 = vector.shape_cast %86 : vector<1x8x128xf32> to vector<8x128xf32>
    %88 = arith.subf %87, %70 : vector<8x128xf32>
    %89 = math.absf %88 : vector<8x128xf32>
    %cst_37 = arith.constant 1.000000e+00 : f32
    %90 = vector.broadcast %cst_37 : f32 to vector<8x128xf32>
    %91 = arith.minimumf %89, %90 : vector<8x128xf32>
    %cst_38 = arith.constant 5.000000e-01 : f32
    %92 = vector.broadcast %cst_38 : f32 to vector<8x128xf32>
    %93 = arith.mulf %92, %91 : vector<8x128xf32>
    %94 = arith.subf %89, %93 : vector<8x128xf32>
    %95 = arith.mulf %91, %94 : vector<8x128xf32>
    %96 = arith.addf %55, %95 : vector<8x128xf32>
    %c2 = arith.constant 2 : index
    %c0_39 = arith.constant 0 : index
    %c0_40 = arith.constant 0 : index
    %97 = vector.load %arg1[%c2, %c0_39, %c0_40] : memref<3x8x128xf32, #tpu.memory_space<vmem>>, vector<1x8x128xf32>
    %98 = vector.shape_cast %97 : vector<1x8x128xf32> to vector<8x128xf32>
    %c127_i32_41 = arith.constant 127 : i32
    %99 = tpu.dynamic_rotate %98 by %c127_i32_41 dim 1 : vector<8x128xf32>, i32 -> vector<8x128xf32>
    %c127_i32_42 = arith.constant 127 : i32
    %100 = tpu.dynamic_rotate %99 by %c127_i32_42 dim 1 : vector<8x128xf32>, i32 -> vector<8x128xf32>
    %101 = arith.addf %99, %100 : vector<8x128xf32>
    %c126_i32_43 = arith.constant 126 : i32
    %102 = tpu.dynamic_rotate %101 by %c126_i32_43 dim 1 : vector<8x128xf32>, i32 -> vector<8x128xf32>
    %103 = arith.addf %101, %102 : vector<8x128xf32>
    %c124_i32_44 = arith.constant 124 : i32
    %104 = tpu.dynamic_rotate %103 by %c124_i32_44 dim 1 : vector<8x128xf32>, i32 -> vector<8x128xf32>
    %105 = arith.addf %103, %104 : vector<8x128xf32>
    %c120_i32_45 = arith.constant 120 : i32
    %106 = tpu.dynamic_rotate %105 by %c120_i32_45 dim 1 : vector<8x128xf32>, i32 -> vector<8x128xf32>
    %107 = arith.addf %105, %106 : vector<8x128xf32>
    %c112_i32_46 = arith.constant 112 : i32
    %108 = tpu.dynamic_rotate %107 by %c112_i32_46 dim 1 : vector<8x128xf32>, i32 -> vector<8x128xf32>
    %109 = arith.addf %107, %108 : vector<8x128xf32>
    %110 = arith.mulf %107, %5 : vector<8x128xf32>
    %111 = arith.mulf %109, %10 : vector<8x128xf32>
    %112 = arith.mulf %110, %110 : vector<8x128xf32>
    %113 = arith.addf %72, %112 : vector<8x128xf32>
    %114 = arith.mulf %111, %111 : vector<8x128xf32>
    %115 = arith.addf %74, %114 : vector<8x128xf32>
    %c2_47 = arith.constant 2 : index
    %c0_48 = arith.constant 0 : index
    %c0_49 = arith.constant 0 : index
    %116 = vector.load %arg2[%c2_47, %c0_48, %c0_49] : memref<3x8x128xf32, #tpu.memory_space<vmem>>, vector<1x8x128xf32>
    %117 = vector.shape_cast %116 : vector<1x8x128xf32> to vector<8x128xf32>
    %118 = arith.subf %117, %110 : vector<8x128xf32>
    %119 = math.absf %118 : vector<8x128xf32>
    %cst_50 = arith.constant 1.000000e+00 : f32
    %120 = vector.broadcast %cst_50 : f32 to vector<8x128xf32>
    %121 = arith.minimumf %119, %120 : vector<8x128xf32>
    %cst_51 = arith.constant 5.000000e-01 : f32
    %122 = vector.broadcast %cst_51 : f32 to vector<8x128xf32>
    %123 = arith.mulf %122, %121 : vector<8x128xf32>
    %124 = arith.subf %119, %123 : vector<8x128xf32>
    %125 = arith.mulf %121, %124 : vector<8x128xf32>
    %126 = arith.addf %85, %125 : vector<8x128xf32>
    %c2_52 = arith.constant 2 : index
    %c0_53 = arith.constant 0 : index
    %c0_54 = arith.constant 0 : index
    %127 = vector.load %arg3[%c2_52, %c0_53, %c0_54] : memref<3x8x128xf32, #tpu.memory_space<vmem>>, vector<1x8x128xf32>
    %128 = vector.shape_cast %127 : vector<1x8x128xf32> to vector<8x128xf32>
    %129 = arith.subf %128, %111 : vector<8x128xf32>
    %130 = math.absf %129 : vector<8x128xf32>
    %cst_55 = arith.constant 1.000000e+00 : f32
    %131 = vector.broadcast %cst_55 : f32 to vector<8x128xf32>
    %132 = arith.minimumf %130, %131 : vector<8x128xf32>
    %cst_56 = arith.constant 5.000000e-01 : f32
    %133 = vector.broadcast %cst_56 : f32 to vector<8x128xf32>
    %134 = arith.mulf %133, %132 : vector<8x128xf32>
    %135 = arith.subf %130, %134 : vector<8x128xf32>
    %136 = arith.mulf %132, %135 : vector<8x128xf32>
    %137 = arith.addf %96, %136 : vector<8x128xf32>
    %cst_57 = arith.constant 1.000000e-24 : f32
    %138 = vector.broadcast %cst_57 : f32 to vector<8x128xf32>
    %139 = arith.addf %113, %138 : vector<8x128xf32>
    %140 = math.rsqrt %139 : vector<8x128xf32>
    %cst_58 = arith.constant 1.000000e-24 : f32
    %141 = vector.broadcast %cst_58 : f32 to vector<8x128xf32>
    %142 = arith.addf %115, %141 : vector<8x128xf32>
    %143 = math.rsqrt %142 : vector<8x128xf32>
    %cst_59 = arith.constant 0.000000e+00 : f32
    %144 = vector.broadcast %cst_59 : f32 to vector<8x128xf32>
    %cst_60 = arith.constant 0.000000e+00 : f32
    %145 = vector.broadcast %cst_60 : f32 to vector<8x128xf32>
    %c0_61 = arith.constant 0 : index
    %c0_62 = arith.constant 0 : index
    %c0_63 = arith.constant 0 : index
    %146 = vector.load %arg4[%c0_61, %c0_62, %c0_63] : memref<3x8x128xf32, #tpu.memory_space<vmem>>, vector<1x8x128xf32>
    %147 = vector.shape_cast %146 : vector<1x8x128xf32> to vector<8x128xf32>
    %148 = arith.mulf %28, %140 : vector<8x128xf32>
    %149 = arith.subf %147, %148 : vector<8x128xf32>
    %150 = math.absf %149 : vector<8x128xf32>
    %cst_64 = arith.constant 1.000000e+00 : f32
    %151 = vector.broadcast %cst_64 : f32 to vector<8x128xf32>
    %152 = arith.minimumf %150, %151 : vector<8x128xf32>
    %cst_65 = arith.constant 5.000000e-01 : f32
    %153 = vector.broadcast %cst_65 : f32 to vector<8x128xf32>
    %154 = arith.mulf %153, %152 : vector<8x128xf32>
    %155 = arith.subf %150, %154 : vector<8x128xf32>
    %156 = arith.mulf %152, %155 : vector<8x128xf32>
    %157 = arith.addf %144, %156 : vector<8x128xf32>
    %c0_66 = arith.constant 0 : index
    %c0_67 = arith.constant 0 : index
    %c0_68 = arith.constant 0 : index
    %158 = vector.load %arg5[%c0_66, %c0_67, %c0_68] : memref<3x8x128xf32, #tpu.memory_space<vmem>>, vector<1x8x128xf32>
    %159 = vector.shape_cast %158 : vector<1x8x128xf32> to vector<8x128xf32>
    %160 = arith.mulf %29, %143 : vector<8x128xf32>
    %161 = arith.subf %159, %160 : vector<8x128xf32>
    %162 = math.absf %161 : vector<8x128xf32>
    %cst_69 = arith.constant 1.000000e+00 : f32
    %163 = vector.broadcast %cst_69 : f32 to vector<8x128xf32>
    %164 = arith.minimumf %162, %163 : vector<8x128xf32>
    %cst_70 = arith.constant 5.000000e-01 : f32
    %165 = vector.broadcast %cst_70 : f32 to vector<8x128xf32>
    %166 = arith.mulf %165, %164 : vector<8x128xf32>
    %167 = arith.subf %162, %166 : vector<8x128xf32>
    %168 = arith.mulf %164, %167 : vector<8x128xf32>
    %169 = arith.addf %145, %168 : vector<8x128xf32>
    %c1_71 = arith.constant 1 : index
    %c0_72 = arith.constant 0 : index
    %c0_73 = arith.constant 0 : index
    %170 = vector.load %arg4[%c1_71, %c0_72, %c0_73] : memref<3x8x128xf32, #tpu.memory_space<vmem>>, vector<1x8x128xf32>
    %171 = vector.shape_cast %170 : vector<1x8x128xf32> to vector<8x128xf32>
    %172 = arith.mulf %69, %140 : vector<8x128xf32>
    %173 = arith.subf %171, %172 : vector<8x128xf32>
    %174 = math.absf %173 : vector<8x128xf32>
    %cst_74 = arith.constant 1.000000e+00 : f32
    %175 = vector.broadcast %cst_74 : f32 to vector<8x128xf32>
    %176 = arith.minimumf %174, %175 : vector<8x128xf32>
    %cst_75 = arith.constant 5.000000e-01 : f32
    %177 = vector.broadcast %cst_75 : f32 to vector<8x128xf32>
    %178 = arith.mulf %177, %176 : vector<8x128xf32>
    %179 = arith.subf %174, %178 : vector<8x128xf32>
    %180 = arith.mulf %176, %179 : vector<8x128xf32>
    %181 = arith.addf %157, %180 : vector<8x128xf32>
    %c1_76 = arith.constant 1 : index
    %c0_77 = arith.constant 0 : index
    %c0_78 = arith.constant 0 : index
    %182 = vector.load %arg5[%c1_76, %c0_77, %c0_78] : memref<3x8x128xf32, #tpu.memory_space<vmem>>, vector<1x8x128xf32>
    %183 = vector.shape_cast %182 : vector<1x8x128xf32> to vector<8x128xf32>
    %184 = arith.mulf %70, %143 : vector<8x128xf32>
    %185 = arith.subf %183, %184 : vector<8x128xf32>
    %186 = math.absf %185 : vector<8x128xf32>
    %cst_79 = arith.constant 1.000000e+00 : f32
    %187 = vector.broadcast %cst_79 : f32 to vector<8x128xf32>
    %188 = arith.minimumf %186, %187 : vector<8x128xf32>
    %cst_80 = arith.constant 5.000000e-01 : f32
    %189 = vector.broadcast %cst_80 : f32 to vector<8x128xf32>
    %190 = arith.mulf %189, %188 : vector<8x128xf32>
    %191 = arith.subf %186, %190 : vector<8x128xf32>
    %192 = arith.mulf %188, %191 : vector<8x128xf32>
    %193 = arith.addf %169, %192 : vector<8x128xf32>
    %c2_81 = arith.constant 2 : index
    %c0_82 = arith.constant 0 : index
    %c0_83 = arith.constant 0 : index
    %194 = vector.load %arg4[%c2_81, %c0_82, %c0_83] : memref<3x8x128xf32, #tpu.memory_space<vmem>>, vector<1x8x128xf32>
    %195 = vector.shape_cast %194 : vector<1x8x128xf32> to vector<8x128xf32>
    %196 = arith.mulf %110, %140 : vector<8x128xf32>
    %197 = arith.subf %195, %196 : vector<8x128xf32>
    %198 = math.absf %197 : vector<8x128xf32>
    %cst_84 = arith.constant 1.000000e+00 : f32
    %199 = vector.broadcast %cst_84 : f32 to vector<8x128xf32>
    %200 = arith.minimumf %198, %199 : vector<8x128xf32>
    %cst_85 = arith.constant 5.000000e-01 : f32
    %201 = vector.broadcast %cst_85 : f32 to vector<8x128xf32>
    %202 = arith.mulf %201, %200 : vector<8x128xf32>
    %203 = arith.subf %198, %202 : vector<8x128xf32>
    %204 = arith.mulf %200, %203 : vector<8x128xf32>
    %205 = arith.addf %181, %204 : vector<8x128xf32>
    %c2_86 = arith.constant 2 : index
    %c0_87 = arith.constant 0 : index
    %c0_88 = arith.constant 0 : index
    %206 = vector.load %arg5[%c2_86, %c0_87, %c0_88] : memref<3x8x128xf32, #tpu.memory_space<vmem>>, vector<1x8x128xf32>
    %207 = vector.shape_cast %206 : vector<1x8x128xf32> to vector<8x128xf32>
    %208 = arith.mulf %111, %143 : vector<8x128xf32>
    %209 = arith.subf %207, %208 : vector<8x128xf32>
    %210 = math.absf %209 : vector<8x128xf32>
    %cst_89 = arith.constant 1.000000e+00 : f32
    %211 = vector.broadcast %cst_89 : f32 to vector<8x128xf32>
    %212 = arith.minimumf %210, %211 : vector<8x128xf32>
    %cst_90 = arith.constant 5.000000e-01 : f32
    %213 = vector.broadcast %cst_90 : f32 to vector<8x128xf32>
    %214 = arith.mulf %213, %212 : vector<8x128xf32>
    %215 = arith.subf %210, %214 : vector<8x128xf32>
    %216 = arith.mulf %212, %215 : vector<8x128xf32>
    %217 = arith.addf %193, %216 : vector<8x128xf32>
    %218 = vector.shape_cast %126 : vector<8x128xf32> to vector<1x8x128xf32>
    %cst_91 = arith.constant dense<0.000000e+00> : vector<1xf32>
    %219 = vector.multi_reduction <add>, %218, %cst_91 [1, 2] : vector<1x8x128xf32> to vector<1xf32>
    %220 = vector.shape_cast %219 : vector<1xf32> to vector<1x1x1xf32>
    %221 = vector.extract %220[0, 0, 0] : f32 from vector<1x1x1xf32>
    %c0_92 = arith.constant 0 : index
    %c0_93 = arith.constant 0 : index
    %222 = memref.load %arg6[%c0_92, %c0_93] : memref<1x4xf32, #tpu.memory_space<smem>>
    memref.store %221, %arg6[%c0_92, %c0_93] : memref<1x4xf32, #tpu.memory_space<smem>>
    %223 = vector.shape_cast %137 : vector<8x128xf32> to vector<1x8x128xf32>
    %cst_94 = arith.constant dense<0.000000e+00> : vector<1xf32>
    %224 = vector.multi_reduction <add>, %223, %cst_94 [1, 2] : vector<1x8x128xf32> to vector<1xf32>
    %225 = vector.shape_cast %224 : vector<1xf32> to vector<1x1x1xf32>
    %226 = vector.extract %225[0, 0, 0] : f32 from vector<1x1x1xf32>
    %c0_95 = arith.constant 0 : index
    %c1_96 = arith.constant 1 : index
    %227 = memref.load %arg6[%c0_95, %c1_96] : memref<1x4xf32, #tpu.memory_space<smem>>
    memref.store %226, %arg6[%c0_95, %c1_96] : memref<1x4xf32, #tpu.memory_space<smem>>
    %228 = vector.shape_cast %205 : vector<8x128xf32> to vector<1x8x128xf32>
    %cst_97 = arith.constant dense<0.000000e+00> : vector<1xf32>
    %229 = vector.multi_reduction <add>, %228, %cst_97 [1, 2] : vector<1x8x128xf32> to vector<1xf32>
    %230 = vector.shape_cast %229 : vector<1xf32> to vector<1x1x1xf32>
    %231 = vector.extract %230[0, 0, 0] : f32 from vector<1x1x1xf32>
    %c0_98 = arith.constant 0 : index
    %c2_99 = arith.constant 2 : index
    %232 = memref.load %arg6[%c0_98, %c2_99] : memref<1x4xf32, #tpu.memory_space<smem>>
    memref.store %231, %arg6[%c0_98, %c2_99] : memref<1x4xf32, #tpu.memory_space<smem>>
    %233 = vector.shape_cast %217 : vector<8x128xf32> to vector<1x8x128xf32>
    %cst_100 = arith.constant dense<0.000000e+00> : vector<1xf32>
    %234 = vector.multi_reduction <add>, %233, %cst_100 [1, 2] : vector<1x8x128xf32> to vector<1xf32>
    %235 = vector.shape_cast %234 : vector<1xf32> to vector<1x1x1xf32>
    %236 = vector.extract %235[0, 0, 0] : f32 from vector<1x1x1xf32>
    %c0_101 = arith.constant 0 : index
    %c3 = arith.constant 3 : index
    %237 = memref.load %arg6[%c0_101, %c3] : memref<1x4xf32, #tpu.memory_space<smem>>
    memref.store %236, %arg6[%c0_101, %c3] : memref<1x4xf32, #tpu.memory_space<smem>>
    return
  }
  func.func @transform_0(%arg0: i32) -> (i32, i32, i32) {
    %c0_i32 = arith.constant 0 : i32
    %c0_i32_0 = arith.constant 0 : i32
    %c0_i32_1 = arith.constant 0 : i32
    return %c0_i32, %arg0, %c0_i32_0 : i32, i32, i32
  }
  func.func @transform_1(%arg0: i32) -> (i32, i32, i32) {
    %c0_i32 = arith.constant 0 : i32
    %c0_i32_0 = arith.constant 0 : i32
    %c0_i32_1 = arith.constant 0 : i32
    return %c0_i32, %arg0, %c0_i32_0 : i32, i32, i32
  }
  func.func @transform_2(%arg0: i32) -> (i32, i32, i32) {
    %c0_i32 = arith.constant 0 : i32
    %c0_i32_0 = arith.constant 0 : i32
    %c0_i32_1 = arith.constant 0 : i32
    return %c0_i32, %arg0, %c0_i32_0 : i32, i32, i32
  }
  func.func @transform_3(%arg0: i32) -> (i32, i32, i32) {
    %c0_i32 = arith.constant 0 : i32
    %c0_i32_0 = arith.constant 0 : i32
    %c0_i32_1 = arith.constant 0 : i32
    return %c0_i32, %arg0, %c0_i32_0 : i32, i32, i32
  }
  func.func @transform_4(%arg0: i32) -> (i32, i32, i32) {
    %c0_i32 = arith.constant 0 : i32
    %c0_i32_0 = arith.constant 0 : i32
    %c0_i32_1 = arith.constant 0 : i32
    return %c0_i32, %arg0, %c0_i32_0 : i32, i32, i32
  }
  func.func @transform_5(%arg0: i32) -> (i32, i32) {
    %c0_i32 = arith.constant 0 : i32
    %c0_i32_0 = arith.constant 0 : i32
    return %arg0, %c0_i32 : i32, i32
  }
}

</mosaic_0001>

<llo_original>
// kernel: tpu_custom_call.1
$region0: #{tpu_custom_call.1}
  #allocation0 [shape = 'u32[]', space=smem, size = 0x4, offset = 0x4, fixed_abs, tag = 'smem constant byte address 0x4 - core index']
  #allocation1 [shape = 'u32[144,128]{1,0:T(1,128)}', space=vmem, size = 0x12000, scoped, tag = 'internal scratch']
  %s0 = inlined_call_operand.hbm [shape: f32[3,8,128], index: 0, kind: input, shape index: {}]
  %s1 = inlined_call_operand.hbm [shape: f32[3,8,128], index: 1, kind: input, shape index: {}]
  %s2 = inlined_call_operand.hbm [shape: f32[3,8,128], index: 2, kind: input, shape index: {}]
  %s3 = inlined_call_operand.hbm [shape: f32[3,8,128], index: 3, kind: input, shape index: {}]
  %s4 = inlined_call_operand.hbm [shape: f32[3,8,128], index: 4, kind: input, shape index: {}]
  %s5 = inlined_call_operand.hbm [shape: f32[1,4], index: 5, kind: output, shape index: {}]
  %s6 = sld [smem:[#allocation0]]
  $region50: #{tpu_custom_call.1} parent=0
    _
  %s8 = ssub.s32 1, %s6
  %s9 = scalar_select 0, %s8, %s6
  $region1: #{tpu_custom_call.1} parent=0
    #allocation2 [shape = 'u8[12288]{0}', space=vmem, size = 0x3000, scoped, tag = 'input window, operand 0, single buffered']
    #allocation3 [shape = 's32[1]{0}', space=sflag, size = 0x4, scoped, tag = 'scoped memory for tpu_custom_call.1']
    #allocation4 [shape = 's32[1]{0}', space=sflag, size = 0x4, scoped, tag = 'scoped memory for tpu_custom_call.1']
    #allocation5 [shape = 'u8[12288]{0}', space=vmem, size = 0x3000, scoped, tag = 'input window, operand 1, single buffered']
    #allocation6 [shape = 's32[1]{0}', space=sflag, size = 0x4, scoped, tag = 'scoped memory for tpu_custom_call.1']
    #allocation7 [shape = 'u8[12288]{0}', space=vmem, size = 0x3000, scoped, tag = 'input window, operand 2, single buffered']
    #allocation8 [shape = 'u8[12288]{0}', space=vmem, size = 0x3000, scoped, tag = 'input window, operand 3, single buffered']
    #allocation9 [shape = 's32[1]{0}', space=sflag, size = 0x4, scoped, tag = 'scoped memory for tpu_custom_call.1']
    #allocation10 [shape = 'u8[12288]{0}', space=vmem, size = 0x3000, scoped, tag = 'input window, operand 4, single buffered']
    #allocation11 [shape = 'u8[512]{0}', space=smem, size = 0x200, scoped, tag = 'output window, operand 0, single buffered']
    %10 = vsyncpa [#allocation3], 0
    %11 = vsyncpa [#allocation6], 0
    %12 = vsyncpa [#allocation9], 0
    %13 = vsyncpa [#allocation4], 0
    // Predicated region
    $region2: #{tpu_custom_call.1} parent=1 // pred_check
      _
    $region3: #{tpu_custom_call.1} parent=1 // pred_check_branch
      %15 = sbr.rel (0) target = $region5
    $region4: #{tpu_custom_call.1} parent=1 // pred_region
      %s17 = ssub.s32 384, 384
      %18 = vsyncadd [#allocation3], %s17
      %s19 = sshll.u32 [#allocation2], 4
      %s20 = int_to_ptr.vmem [resolvable:$true] %s19
      %25 = dma.hbm_to_vmem [thread:$0]  %s0, 384, %s20, [#allocation3], 128, 128, 8
    $region5: #{tpu_custom_call.1} parent=1 // pred_fallthru
      _
    // Predicated region
    $region6: #{tpu_custom_call.1} parent=1 // pred_check
      _
    $region7: #{tpu_custom_call.1} parent=1 // pred_check_branch
      %27 = sbr.rel (0) target = $region9
    $region8: #{tpu_custom_call.1} parent=1 // pred_region
      %s29 = ssub.s32 384, 384
      %30 = vsyncadd [#allocation6], %s29
      %s31 = sshll.u32 [#allocation5], 4
      %s32 = int_to_ptr.vmem [resolvable:$true] %s31
      %37 = dma.hbm_to_vmem [thread:$0]  %s1, 384, %s32, [#allocation6], 128, 128, 8
    $region9: #{tpu_custom_call.1} parent=1 // pred_fallthru
      _
    // Predicated region
    $region10: #{tpu_custom_call.1} parent=1 // pred_check
      _
    $region11: #{tpu_custom_call.1} parent=1 // pred_check_branch
      %39 = sbr.rel (0) target = $region13
    $region12: #{tpu_custom_call.1} parent=1 // pred_region
      %s41 = ssub.s32 384, 384
      %42 = vsyncadd [#allocation6], %s41
      %s43 = sshll.u32 [#allocation7], 4
      %s44 = int_to_ptr.vmem [resolvable:$true] %s43
      %49 = dma.hbm_to_vmem [thread:$0]  %s2, 384, %s44, [#allocation6], 128, 128, 8
    $region13: #{tpu_custom_call.1} parent=1 // pred_fallthru
      _
    // Predicated region
    $region14: #{tpu_custom_call.1} parent=1 // pred_check
      _
    $region15: #{tpu_custom_call.1} parent=1 // pred_check_branch
      %51 = sbr.rel (0) target = $region17
    $region16: #{tpu_custom_call.1} parent=1 // pred_region
      %s53 = ssub.s32 384, 384
      %54 = vsyncadd [#allocation9], %s53
      %s55 = sshll.u32 [#allocation8], 4
      %s56 = int_to_ptr.vmem [resolvable:$true] %s55
      %61 = dma.hbm_to_vmem [thread:$0]  %s3, 384, %s56, [#allocation9], 128, 128, 8
    $region17: #{tpu_custom_call.1} parent=1 // pred_fallthru
      _
    // Predicated region
    $region18: #{tpu_custom_call.1} parent=1 // pred_check
      _
    $region19: #{tpu_custom_call.1} parent=1 // pred_check_branch
      %63 = sbr.rel (0) target = $region21
    $region20: #{tpu_custom_call.1} parent=1 // pred_region
      %s65 = ssub.s32 384, 384
      %66 = vsyncadd [#allocation9], %s65
      %s67 = sshll.u32 [#allocation10], 4
      %s68 = int_to_ptr.vmem [resolvable:$true] %s67
      %73 = dma.hbm_to_vmem [thread:$0]  %s4, 384, %s68, [#allocation9], 128, 128, 8
    $region21: #{tpu_custom_call.1} parent=1 // pred_fallthru
      _
    // Predicated region
    $region22: #{tpu_custom_call.1} parent=1 // pred_check
      _
    $region23: #{tpu_custom_call.1} parent=1 // pred_check_branch
      %75 = sbr.rel (0) target = $region25
    $region24: #{tpu_custom_call.1} parent=1 // pred_region
      %76 = dma.done [#allocation3], 384
    $region25: #{tpu_custom_call.1} parent=1 // pred_fallthru
      _
    // Predicated region
    $region26: #{tpu_custom_call.1} parent=1 // pred_check
      _
    $region27: #{tpu_custom_call.1} parent=1 // pred_check_branch
      %78 = sbr.rel (0) target = $region29
    $region28: #{tpu_custom_call.1} parent=1 // pred_region
      %79 = dma.done [#allocation6], 384
    $region29: #{tpu_custom_call.1} parent=1 // pred_fallthru
      _
    // Predicated region
    $region30: #{tpu_custom_call.1} parent=1 // pred_check
      _
    $region31: #{tpu_custom_call.1} parent=1 // pred_check_branch
      %81 = sbr.rel (0) target = $region33
    $region32: #{tpu_custom_call.1} parent=1 // pred_region
      %82 = dma.done [#allocation6], 384
    $region33: #{tpu_custom_call.1} parent=1 // pred_fallthru
      _
    // Predicated region
    $region34: #{tpu_custom_call.1} parent=1 // pred_check
      _
    $region35: #{tpu_custom_call.1} parent=1 // pred_check_branch
      %84 = sbr.rel (0) target = $region37
    $region36: #{tpu_custom_call.1} parent=1 // pred_region
      %85 = dma.done [#allocation9], 384
    $region37: #{tpu_custom_call.1} parent=1 // pred_fallthru
      _
    // Predicated region
    $region38: #{tpu_custom_call.1} parent=1 // pred_check
      _
    $region39: #{tpu_custom_call.1} parent=1 // pred_check_branch
      %87 = sbr.rel (0) target = $region41
    $region40: #{tpu_custom_call.1} parent=1 // pred_region
      %88 = dma.done [#allocation9], 384
    $region41: #{tpu_custom_call.1} parent=1 // pred_fallthru
      _
    %v89 = vlaneseq
    %v90 = vand.u32 %v89, 127
    %vm91 = vcmp.lt.s32.totalorder %v90, 112
    %v92 = vsel %vm91, 0.01, 0.0
    %vm93 = vcmp.lt.s32.totalorder %v90, 96
    %v94 = vsel %vm93, 0.01, 0.0
    %v95 = vld [vmem:[#allocation2] sm:$0xff]
    %96 = vrot.lane.b32.xlu0 %v95, 127
    %v97 = vpop.permute.xlu0 %96
    %98 = vrot.lane.b32.xlu0 %v97, 127
    %v99 = vpop.permute.xlu0 %98
    %v100 = vadd.f32 %v97, %v99
    %101 = vrot.lane.b32.xlu0 %v100, 126
    %v102 = vpop.permute.xlu0 %101
    %v103 = vadd.f32 %v100, %v102
    %104 = vrot.lane.b32.xlu0 %v103, 124
    %v105 = vpop.permute.xlu0 %104
    %v106 = vadd.f32 %v103, %v105
    %107 = vrot.lane.b32.xlu0 %v106, 120
    %v108 = vpop.permute.xlu0 %107
    %v109 = vadd.f32 %v106, %v108
    %110 = vrot.lane.b32.xlu0 %v109, 112
    %v111 = vpop.permute.xlu0 %110
    %v112 = vadd.f32 %v109, %v111
    %v113 = vmul.f32 %v109, %v92
    %v114 = vmul.f32 %v112, %v94
    %v115 = vmul.f32 %v113, %v113
    %v116 = vadd.f32 %v115, 0.0
    %v117 = vmul.f32 %v114, %v114
    %v118 = vadd.f32 %v117, 0.0
    %v119 = vld [vmem:[#allocation5] sm:$0xff]
    %v120 = vsub.f32 %v119, %v113
    %v121 = vand.u32 2147483647, %v120
    %v122 = vmin.f32 %v121, 1.0
    %v123 = vmul.f32 %v122, 0.5
    %v124 = vsub.f32 %v121, %v123
    %v125 = vmul.f32 %v122, %v124
    %v126 = vadd.f32 %v125, 0.0
    %v127 = vld [vmem:[#allocation7] sm:$0xff]
    %v128 = vsub.f32 %v127, %v114
    %v129 = vand.u32 2147483647, %v128
    %v130 = vmin.f32 %v129, 1.0
    %v131 = vmul.f32 %v130, 0.5
    %v132 = vsub.f32 %v129, %v131
    %v133 = vmul.f32 %v130, %v132
    %v134 = vadd.f32 %v133, 0.0
    %s135 = scalar_lea.vmem [#allocation2], 8
    %v136 = vld [vmem:[%s135] sm:$0xff]
    %137 = vrot.lane.b32.xlu0 %v136, 127
    %v138 = vpop.permute.xlu0 %137
    %139 = vrot.lane.b32.xlu0 %v138, 127
    %v140 = vpop.permute.xlu0 %139
    %v141 = vadd.f32 %v138, %v140
    %142 = vrot.lane.b32.xlu0 %v141, 126
    %v143 = vpop.permute.xlu0 %142
    %v144 = vadd.f32 %v141, %v143
    %145 = vrot.lane.b32.xlu0 %v144, 124
    %v146 = vpop.permute.xlu0 %145
    %v147 = vadd.f32 %v144, %v146
    %148 = vrot.lane.b32.xlu0 %v147, 120
    %v149 = vpop.permute.xlu0 %148
    %v150 = vadd.f32 %v147, %v149
    %151 = vrot.lane.b32.xlu0 %v150, 112
    %v152 = vpop.permute.xlu0 %151
    %v153 = vadd.f32 %v150, %v152
    %v154 = vmul.f32 %v150, %v92
    %v155 = vmul.f32 %v153, %v94
    %v156 = vmul.f32 %v154, %v154
    %v157 = vadd.f32 %v116, %v156
    %v158 = vmul.f32 %v155, %v155
    %v159 = vadd.f32 %v118, %v158
    %s160 = scalar_lea.vmem [#allocation5], 8
    %v161 = vld [vmem:[%s160] sm:$0xff]
    %v162 = vsub.f32 %v161, %v154
    %v163 = vand.u32 2147483647, %v162
    %v164 = vmin.f32 %v163, 1.0
    %v165 = vmul.f32 %v164, 0.5
    %v166 = vsub.f32 %v163, %v165
    %v167 = vmul.f32 %v164, %v166
    %v168 = vadd.f32 %v126, %v167
    %s169 = scalar_lea.vmem [#allocation7], 8
    %v170 = vld [vmem:[%s169] sm:$0xff]
    %v171 = vsub.f32 %v170, %v155
    %v172 = vand.u32 2147483647, %v171
    %v173 = vmin.f32 %v172, 1.0
    %v174 = vmul.f32 %v173, 0.5
    %v175 = vsub.f32 %v172, %v174
    %v176 = vmul.f32 %v173, %v175
    %v177 = vadd.f32 %v134, %v176
    %s178 = scalar_lea.vmem [#allocation2], 16
    %v179 = vld [vmem:[%s178] sm:$0xff]
    %180 = vrot.lane.b32.xlu0 %v179, 127
    %v181 = vpop.permute.xlu0 %180
    %182 = vrot.lane.b32.xlu0 %v181, 127
    %v183 = vpop.permute.xlu0 %182
    %v184 = vadd.f32 %v181, %v183
    %185 = vrot.lane.b32.xlu0 %v184, 126
    %v186 = vpop.permute.xlu0 %185
    %v187 = vadd.f32 %v184, %v186
    %188 = vrot.lane.b32.xlu0 %v187, 124
    %v189 = vpop.permute.xlu0 %188
    %v190 = vadd.f32 %v187, %v189
    %191 = vrot.lane.b32.xlu0 %v190, 120
    %v192 = vpop.permute.xlu0 %191
    %v193 = vadd.f32 %v190, %v192
    %194 = vrot.lane.b32.xlu0 %v193, 112
    %v195 = vpop.permute.xlu0 %194
    %v196 = vadd.f32 %v193, %v195
    %v197 = vmul.f32 %v193, %v92
    %v198 = vmul.f32 %v196, %v94
    %v199 = vmul.f32 %v197, %v197
    %v200 = vadd.f32 %v157, %v199
    %v201 = vmul.f32 %v198, %v198
    %v202 = vadd.f32 %v159, %v201
    %s203 = scalar_lea.vmem [#allocation5], 16
    %v204 = vld [vmem:[%s203] sm:$0xff]
    %v205 = vsub.f32 %v204, %v197
    %v206 = vand.u32 2147483647, %v205
    %v207 = vmin.f32 %v206, 1.0
    %v208 = vmul.f32 %v207, 0.5
    %v209 = vsub.f32 %v206, %v208
    %v210 = vmul.f32 %v207, %v209
    %v211 = vadd.f32 %v168, %v210
    %s212 = scalar_lea.vmem [#allocation7], 16
    %v213 = vld [vmem:[%s212] sm:$0xff]
    %v214 = vsub.f32 %v213, %v198
    %v215 = vand.u32 2147483647, %v214
    %v216 = vmin.f32 %v215, 1.0
    %v217 = vmul.f32 %v216, 0.5
    %v218 = vsub.f32 %v215, %v217
    %v219 = vmul.f32 %v216, %v218
    %v220 = vadd.f32 %v177, %v219
    %v221 = vadd.f32 %v200, 1e-24
    %v222 = vrsqrt.pop %v221
    %v223 = vadd.f32 %v202, 1e-24
    %v224 = vrsqrt.pop %v223
    %v225 = vld [vmem:[#allocation8] sm:$0xff]
    %v226 = vmul.f32 %v113, %v222
    %v227 = vsub.f32 %v225, %v226
    %v228 = vand.u32 2147483647, %v227
    %v229 = vmin.f32 %v228, 1.0
    %v230 = vmul.f32 %v229, 0.5
    %v231 = vsub.f32 %v228, %v230
    %v232 = vmul.f32 %v229, %v231
    %v233 = vadd.f32 %v232, 0.0
    %v234 = vld [vmem:[#allocation10] sm:$0xff]
    %v235 = vmul.f32 %v114, %v224
    %v236 = vsub.f32 %v234, %v235
    %v237 = vand.u32 2147483647, %v236
    %v238 = vmin.f32 %v237, 1.0
    %v239 = vmul.f32 %v238, 0.5
    %v240 = vsub.f32 %v237, %v239
    %v241 = vmul.f32 %v238, %v240
    %v242 = vadd.f32 %v241, 0.0
    %s243 = scalar_lea.vmem [#allocation8], 8
    %v244 = vld [vmem:[%s243] sm:$0xff]
    %v245 = vmul.f32 %v154, %v222
    %v246 = vsub.f32 %v244, %v245
    %v247 = vand.u32 2147483647, %v246
    %v248 = vmin.f32 %v247, 1.0
    %v249 = vmul.f32 %v248, 0.5
    %v250 = vsub.f32 %v247, %v249
    %v251 = vmul.f32 %v248, %v250
    %v252 = vadd.f32 %v233, %v251
    %s253 = scalar_lea.vmem [#allocation10], 8
    %v254 = vld [vmem:[%s253] sm:$0xff]
    %v255 = vmul.f32 %v155, %v224
    %v256 = vsub.f32 %v254, %v255
    %v257 = vand.u32 2147483647, %v256
    %v258 = vmin.f32 %v257, 1.0
    %v259 = vmul.f32 %v258, 0.5
    %v260 = vsub.f32 %v257, %v259
    %v261 = vmul.f32 %v258, %v260
    %v262 = vadd.f32 %v242, %v261
    %s263 = scalar_lea.vmem [#allocation8], 16
    %v264 = vld [vmem:[%s263] sm:$0xff]
    %v265 = vmul.f32 %v197, %v222
    %v266 = vsub.f32 %v264, %v265
    %v267 = vand.u32 2147483647, %v266
    %v268 = vmin.f32 %v267, 1.0
    %v269 = vmul.f32 %v268, 0.5
    %v270 = vsub.f32 %v267, %v269
    %v271 = vmul.f32 %v268, %v270
    %v272 = vadd.f32 %v252, %v271
    %s273 = scalar_lea.vmem [#allocation10], 16
    %v274 = vld [vmem:[%s273] sm:$0xff]
    %v275 = vmul.f32 %v198, %v224
    %v276 = vsub.f32 %v274, %v275
    %v277 = vand.u32 2147483647, %v276
    %v278 = vmin.f32 %v277, 1.0
    %v279 = vmul.f32 %v278, 0.5
    %v280 = vsub.f32 %v277, %v279
    %v281 = vmul.f32 %v278, %v280
    %v282 = vadd.f32 %v262, %v281
    %283 = vadd.xlane.f32.xlu0 %v211
    %v284 = vpop.xlane.xlu0 %283
    %v285 = vrot.slane %v284, 4
    %v286 = vadd.f32 %v284, %v285
    %v287 = vrot.slane %v286, 2
    %v288 = vadd.f32 %v286, %v287
    %v289 = vrot.slane %v288, 1
    %v290 = vadd.f32 %v288, %v289
    %s291 = vtos %v290
    %s292 = scalar_lea.smem [#allocation11], 0
    %293 = sst [smem:[%s292]] %s291
    %294 = vadd.xlane.f32.xlu0 %v220
    %v295 = vpop.xlane.xlu0 %294
    %v296 = vrot.slane %v295, 4
    %v297 = vadd.f32 %v295, %v296
    %v298 = vrot.slane %v297, 2
    %v299 = vadd.f32 %v297, %v298
    %v300 = vrot.slane %v299, 1
    %v301 = vadd.f32 %v299, %v300
    %s302 = vtos %v301
    %s303 = scalar_lea.smem [#allocation11], 1
    %304 = sst [smem:[%s303]] %s302
    %305 = vadd.xlane.f32.xlu0 %v272
    %v306 = vpop.xlane.xlu0 %305
    %v307 = vrot.slane %v306, 4
    %v308 = vadd.f32 %v306, %v307
    %v309 = vrot.slane %v308, 2
    %v310 = vadd.f32 %v308, %v309
    %v311 = vrot.slane %v310, 1
    %v312 = vadd.f32 %v310, %v311
    %s313 = vtos %v312
    %s314 = scalar_lea.smem [#allocation11], 2
    %315 = sst [smem:[%s314]] %s313
    %316 = vadd.xlane.f32.xlu0 %v282
    %v317 = vpop.xlane.xlu0 %316
    %v318 = vrot.slane %v317, 4
    %v319 = vadd.f32 %v317, %v318
    %v320 = vrot.slane %v319, 2
    %v321 = vadd.f32 %v319, %v320
    %v322 = vrot.slane %v321, 1
    %v323 = vadd.f32 %v321, %v322
    %s324 = vtos %v323
    %s325 = scalar_lea.smem [#allocation11], 3
    %326 = sst [smem:[%s325]] %s324
    // Predicated region
    $region42: #{tpu_custom_call.1} parent=1 // pred_check
      _
    $region43: #{tpu_custom_call.1} parent=1 // pred_check_branch
      %328 = sbr.rel (0) target = $region45
    $region44: #{tpu_custom_call.1} parent=1 // pred_region
      %s330 = ssub.s32 16, 16
      %331 = vsyncadd [#allocation4], %s330
      %334 = dma.smem_to_hbm [#allocation11], 16, %s5, [#allocation4]
    $region45: #{tpu_custom_call.1} parent=1 // pred_fallthru
      _
    // Predicated region
    $region46: #{tpu_custom_call.1} parent=1 // pred_check
      _
    $region47: #{tpu_custom_call.1} parent=1 // pred_check_branch
      %336 = sbr.rel (0) target = $region49
    $region48: #{tpu_custom_call.1} parent=1 // pred_region
      %337 = dma.done [#allocation4], 16
    $region49: #{tpu_custom_call.1} parent=1 // pred_fallthru
      _
    %338 = sfence
    %339 = vsyncpa [#allocation3], 1
    %340 = vsyncpa [#allocation6], 1
    %341 = vsyncpa [#allocation9], 1
    %342 = vsyncpa [#allocation4], 1

</llo_original>
